<compile_context>
chip_gen: v7x
topology: tpu7x:2x2x1
jax: 0.10.0
libtpu: 0.0.40
codegen_flags: <defaults>
</compile_context>

<pallas_src>
import functools
import numpy as np

import jax
import jax.numpy as jnp
from jax.experimental import pallas as pl
from jax.experimental.pallas import tpu as pltpu


def _round_up(x, m):
    return (x + m - 1) // m * m


# --------------------------------------------------------------------------
# Exact linear-operator constructors (host-side numpy constants)
# --------------------------------------------------------------------------
def _adaptive_pool_matrix(in_size, out_size):
    """Exact AdaptiveAvgPool1d averaging matrix, shape (out_size, in_size)."""
    P = np.zeros((out_size, in_size), np.float32)
    for i in range(out_size):
        start = (i * in_size) // out_size
        end = -((-(i + 1) * in_size) // out_size)  # ceil((i+1)*in/out)
        P[i, start:end] = 1.0 / float(end - start)
    return P


def _bilinear_matrix(out_size, in_size):
    """1-D bilinear interpolation matrix, align_corners=True, (out_size, in_size)."""
    U = np.zeros((out_size, in_size), np.float32)
    if in_size == 1 or out_size == 1:
        U[:, 0] = 1.0
        return U
    scale = (in_size - 1) / (out_size - 1)
    for y in range(out_size):
        sy = y * scale
        i0 = min(int(np.floor(sy)), in_size - 1)
        i1 = min(i0 + 1, in_size - 1)
        frac = sy - i0
        U[y, i0] += 1.0 - frac
        U[y, i1] += frac
    return U


# --------------------------------------------------------------------------
# Fused Pallas kernel (NCHW-native, transposed operands):
#   out_t = B^T-applied( relu( W'^T @ (x @ P^T) + shift ) )
#
#   x_ref     (C, HW)        bf16   per-batch image slab (NCHW order)
#   pT_ref    (HW, SS)       bf16   adaptive-avg-pool operator (transposed)
#   wT_ref    (Cout_p, C)    bf16   1x1-conv weight with BN scale folded in (transposed)
#   shift_ref (Cout_p, 1)    f32    folded BN shift / conv bias (column)
#   bT_ref    (SS, HW)       bf16   bilinear upsample operator (transposed, only if s > 1)
#   o_ref     (Cout_p, HW)   bf16   output slab in NCHW order
# --------------------------------------------------------------------------
def _psp_block_kernel(x_ref, pT_ref, wT_ref, shift_ref, *rest, pool_is_global):
    if pool_is_global:
        (o_ref,) = rest
        bT_ref = None
    else:
        bT_ref, o_ref = rest

    x = x_ref[...]                                                    # (C, HW) bf16
    # Adaptive average pool as one MXU matmul (for s == 1 this is exactly the
    # "ones/HW" column-vector matmul -> global mean, no f32 slab temporary).
    pooled_t = jnp.dot(x, pT_ref[...],
                       preferred_element_type=jnp.float32)            # (C, SS) f32

    # 1x1 conv (+ folded BN scale) + shift + ReLU, bf16 operands / f32 accumulate.
    y_t = jnp.dot(wT_ref[...], pooled_t.astype(jnp.bfloat16),
                  preferred_element_type=jnp.float32)                 # (Cout_p, SS) f32
    y_t = jnp.maximum(y_t + shift_ref[...], 0.0)

    if pool_is_global:
        # 1x1 -> HxW upsample is a lane broadcast; cast to bf16 first so no f32 temp.
        o_ref[...] = jnp.broadcast_to(y_t.astype(o_ref.dtype), o_ref.shape)
    else:
        out_t = jnp.dot(y_t.astype(jnp.bfloat16), bT_ref[...],
                        preferred_element_type=jnp.float32)           # (Cout_p, HW) f32
        o_ref[...] = out_t.astype(o_ref.dtype)


# --------------------------------------------------------------------------
# Wrapper: PSPBlock forward (inference).  Returns bf16 NCHW.
# --------------------------------------------------------------------------
def psp_block_forward(params, x, pool_size):
    N, C, H, W = x.shape
    s = int(pool_size)
    HW = H * W
    SS = s * s
    Cout = params["w"].shape[1]
    Cout_p = _round_up(Cout, 8)      # out channels are the sublane dim now

    # NCHW -> (N, C, HW): a pure reshape, NO transpose.  bf16 operands halve HBM/VMEM
    # traffic and feed the MXU natively.
    xf = x.reshape(N, C, HW).astype(jnp.bfloat16)

    # Fold BN scale into the weight; keep it transposed (Cout_p, C).
    wT = (params["w"] * params["scale"][None, :]).T                   # (Cout, C)
    wT = jnp.pad(wT, ((0, Cout_p - Cout), (0, 0))).astype(jnp.bfloat16)
    shift = jnp.pad(params["shift"], (0, Cout_p - Cout)).astype(jnp.float32)
    shift = shift.reshape(Cout_p, 1)

    # Exact pool / bilinear (align_corners=True) operators as constants (transposed).
    P = np.kron(_adaptive_pool_matrix(H, s), _adaptive_pool_matrix(W, s))   # (SS, HW)
    pT = jnp.asarray(P.T, jnp.bfloat16)                                     # (HW, SS)
    pool_is_global = (s == 1)
    if not pool_is_global:
        B = np.kron(_bilinear_matrix(H, s), _bilinear_matrix(W, s))         # (HW, SS)
        bT = jnp.asarray(B.T, jnp.bfloat16)                                 # (SS, HW)

    # ---- pipelining / scheduling hints ------------------------------------
    bf16 = 2
    in_bytes = C * HW * bf16 + HW * SS * bf16 + Cout_p * C * bf16 + Cout_p * 4
    if not pool_is_global:
        in_bytes += SS * HW * bf16
    out_bytes = Cout_p * HW * bf16
    interm_bytes = (C * SS + Cout_p * SS + Cout_p * HW) * 4     # live f32 temps
    need = 2 * (in_bytes + out_bytes) + interm_bytes            # double-buffered I/O
    vmem_ceiling = 56 * 2**20                # safe on v5e/v6e (128 MiB) and v7x (64 MiB)
    vmem_limit = int(min(max(2 * need, 32 * 2**20), vmem_ceiling))

    flops = N * (2 * C * HW * SS + 2 * Cout_p * C * SS
                 + (0 if pool_is_global else 2 * Cout_p * SS * HW))
    bytes_accessed = N * (C * HW * bf16 + Cout_p * HW * bf16) + in_bytes
    cost = pl.CostEstimate(flops=flops, transcendentals=0,
                           bytes_accessed=int(bytes_accessed))

    # ---- specs -------------------------------------------------------------
    in_specs = [
        pl.BlockSpec((None, C, HW), lambda n: (n, 0, 0)),     # x, per-batch slab
        pl.BlockSpec((HW, SS), lambda n: (0, 0)),             # pool operator (P^T)
        pl.BlockSpec((Cout_p, C), lambda n: (0, 0)),          # folded weight (W'^T)
        pl.BlockSpec((Cout_p, 1), lambda n: (0, 0)),          # shift column
    ]
    inputs = [xf, pT, wT, shift]
    if not pool_is_global:
        in_specs.append(pl.BlockSpec((SS, HW), lambda n: (0, 0)))   # upsample op (B^T)
        inputs.append(bT)

    out = pl.pallas_call(
        functools.partial(_psp_block_kernel, pool_is_global=pool_is_global),
        out_shape=jax.ShapeDtypeStruct((N, Cout_p, HW), jnp.bfloat16),
        grid=(N,),
        in_specs=in_specs,
        out_specs=pl.BlockSpec((None, Cout_p, HW), lambda n: (n, 0, 0)),
        compiler_params=pltpu.CompilerParams(
            dimension_semantics=("parallel",),
            vmem_limit_bytes=vmem_limit),
        cost_estimate=cost,
    )(*inputs)

    out = out.reshape(N, Cout_p, H, W)
    if Cout_p != Cout:
        out = out[:, :Cout]
    return out                       # bf16, NCHW, no wrapper transposes


# --------------------------------------------------------------------------
# Pure-jnp references (for verification)
# --------------------------------------------------------------------------
def psp_block_ref_bf16(params, x, pool_size):
    """Mirrors the kernel's bf16-operand / f32-accumulate / bf16-output math."""
    N, C, H, W = x.shape
    s = int(pool_size)
    HW = H * W
    Cout = params["w"].shape[1]
    xf = x.reshape(N, C, HW).astype(jnp.bfloat16)
    wT = (params["w"] * params["scale"][None, :]).T.astype(jnp.bfloat16)    # (Cout, C)
    shift = params["shift"].astype(jnp.float32)
    P = jnp.asarray(np.kron(_adaptive_pool_matrix(H, s), _adaptive_pool_matrix(W, s)),
                    jnp.bfloat16)                                            # (SS, HW)
    pooled = jnp.einsum("nch,ph->ncp", xf, P, preferred_element_type=jnp.float32)
    y = jnp.einsum("oc,ncp->nop", wT, pooled.astype(jnp.bfloat16),
                   preferred_element_type=jnp.float32) + shift[None, :, None]
    y = jnp.maximum(y, 0.0)
    if s == 1:
        up = jnp.broadcast_to(y.astype(jnp.bfloat16), (N, Cout, HW))
    else:
        B = jnp.asarray(np.kron(_bilinear_matrix(H, s), _bilinear_matrix(W, s)),
                        jnp.bfloat16)                                        # (HW, SS)
        up = jnp.einsum("nop,hp->noh", y.astype(jnp.bfloat16), B,
                        preferred_element_type=jnp.float32).astype(jnp.bfloat16)
    return up.reshape(N, Cout, H, W)


def psp_block_ref_f32(params, x, pool_size):
    """Full-precision reference with the original (unfolded) BN/bias semantics."""
    N, C, H, W = x.shape
    s = int(pool_size)
    xf = x.reshape(N, C, H * W)
    P = jnp.asarray(np.kron(_adaptive_pool_matrix(H, s), _adaptive_pool_matrix(W, s)),
                    jnp.float32)
    Bm = jnp.asarray(np.kron(_bilinear_matrix(H, s), _bilinear_matrix(W, s)), jnp.float32)
    pooled = jnp.einsum("nch,ph->ncp", xf, P)
    y = (jnp.einsum("co,ncp->nop", params["w"], pooled)
         * params["scale"][None, :, None] + params["shift"][None, :, None])
    y = jnp.maximum(y, 0.0)
    up = jnp.einsum("nop,hp->noh", y, Bm)
    return up.reshape(N, -1, H, W)


# --------------------------------------------------------------------------
# Deterministic parameter init (mirrors PSPBlock / Conv2dReLU shapes)
# --------------------------------------------------------------------------
def init_psp_block_params(key, in_channels, out_channels, pool_size):
    eps = 1e-5
    use_bn = pool_size != 1            # PSPBlock: pool_size == 1 -> use_bn = False
    keys = jax.random.split(key, 6)
    w = 0.1 * jax.random.normal(keys[0], (in_channels, out_channels), jnp.float32)
    if use_bn:
        gamma = 1.0 + 0.1 * jax.random.normal(keys[1], (out_channels,), jnp.float32)
        beta = 0.1 * jax.random.normal(keys[2], (out_channels,), jnp.float32)
        mean = 0.1 * jax.random.normal(keys[3], (out_channels,), jnp.float32)
        var = 1.0 + 0.1 * jax.random.uniform(keys[4], (out_channels,), jnp.float32)
        scale = gamma / jnp.sqrt(var + eps)
        shift = beta - mean * scale
    else:
        bias = 0.1 * jax.random.normal(keys[1], (out_channels,), jnp.float32)
        scale = jnp.ones((out_channels,), jnp.float32)
        shift = bias
    return {"w": w, "scale": scale, "shift": shift}


if __name__ == "__main__":
    # Small shapes consistent with the module; H*W = 256 keeps output stores lane-dense,
    # the (pool_size=3, OUT=60) config exercises the channel-padding/slice path.
    N, C, H, W = 2, 64, 16, 16
    OUT = 128

    key = jax.random.PRNGKey(0)
    k_x, *k_params = jax.random.split(key, 8)
    x = jax.random.normal(k_x, (N, C, H, W), jnp.float32)

    fwd = jax.jit(psp_block_forward, static_argnames=("pool_size",))

    configs = [(1, OUT), (2, OUT), (3, OUT), (6, OUT), (3, 60)]
    for (s, cout), kp in zip(configs, k_params):
        params = init_psp_block_params(kp, C, cout, s)
        out = jax.block_until_ready(fwd(params, x, pool_size=s))
        assert out.shape == (N, cout, H, W), (s, cout, out.shape)
        assert out.dtype == jnp.bfloat16

        out_f = out.astype(jnp.float32)
        ref_b = psp_block_ref_bf16(params, x, s).astype(jnp.float32)
        ref_f = psp_block_ref_f32(params, x, s)
        d_kernel = float(jnp.max(jnp.abs(out_f - ref_b)))   # vs same-precision math
        d_exact = float(jnp.max(jnp.abs(out_f - ref_f)))    # vs f32 torch-like math
        assert d_kernel < 2e-2, f"pool={s} out={cout}: kernel vs bf16-ref diff {d_kernel}"
        assert d_exact < 1e-1, f"pool={s} out={cout}: kernel vs f32-ref diff {d_exact}"

    print("KERNEL_OK")
</pallas_src>

<mosaic_0001>
module attributes {stable_mosaic.version = 11 : i64} {
  func.func @_psp_block_kernel(%arg0: i32, %arg1: memref<1x64x256xbf16, #tpu.memory_space<vmem>>, %arg2: memref<256x1xbf16, #tpu.memory_space<vmem>>, %arg3: memref<128x64xbf16, #tpu.memory_space<vmem>>, %arg4: memref<128x1xf32, #tpu.memory_space<vmem>>, %arg5: memref<1x128x256xbf16, #tpu.memory_space<vmem>>) attributes {dimension_semantics = [#tpu.dimension_semantics<parallel>], iteration_bounds = array<i64: 2>, scalar_prefetch = 0 : i64, scratch_operands = 0 : i64, tpu.core_type = #tpu.core_type<tc>, window_params = [{transform_indices = @transform_0, window_bounds = array<i64: 1, 64, 256>}, {pipeline_mode = #tpu.pipeline_mode<synchronous>, transform_indices = @transform_1, window_bounds = array<i64: 256, 1>}, {pipeline_mode = #tpu.pipeline_mode<synchronous>, transform_indices = @transform_2, window_bounds = array<i64: 128, 64>}, {pipeline_mode = #tpu.pipeline_mode<synchronous>, transform_indices = @transform_3, window_bounds = array<i64: 128, 1>}, {transform_indices = @transform_4, window_bounds = array<i64: 1, 128, 256>}]} {
    %c0 = arith.constant 0 : index
    %c0_0 = arith.constant 0 : index
    %c0_1 = arith.constant 0 : index
    %0 = vector.load %arg1[%c0, %c0_0, %c0_1] : memref<1x64x256xbf16, #tpu.memory_space<vmem>>, vector<1x64x256xbf16>
    %1 = vector.shape_cast %0 : vector<1x64x256xbf16> to vector<64x256xbf16>
    %c0_2 = arith.constant 0 : index
    %c0_3 = arith.constant 0 : index
    %2 = vector.load %arg2[%c0_2, %c0_3] : memref<256x1xbf16, #tpu.memory_space<vmem>>, vector<256x1xbf16>
    %cst = arith.constant dense<0.000000e+00> : vector<64x1xf32>
    %3 = tpu.matmul %1, %2, %cst {dimension_numbers = #tpu.dot_dimension_numbers<[1], [0], [0], [1], [0, 0, 1, 1], [], []>} : vector<64x256xbf16>, vector<256x1xbf16>, vector<64x1xf32> -> vector<64x1xf32>
    %c0_4 = arith.constant 0 : index
    %c0_5 = arith.constant 0 : index
    %4 = vector.load %arg3[%c0_4, %c0_5] : memref<128x64xbf16, #tpu.memory_space<vmem>>, vector<128x64xbf16>
    %5 = arith.truncf %3 : vector<64x1xf32> to vector<64x1xbf16>
    %cst_6 = arith.constant dense<0.000000e+00> : vector<128x1xf32>
    %6 = tpu.matmul %4, %5, %cst_6 {dimension_numbers = #tpu.dot_dimension_numbers<[1], [0], [0], [1], [0, 0, 1, 1], [], []>} : vector<128x64xbf16>, vector<64x1xbf16>, vector<128x1xf32> -> vector<128x1xf32>
    %c0_7 = arith.constant 0 : index
    %c0_8 = arith.constant 0 : index
    %7 = vector.load %arg4[%c0_7, %c0_8] : memref<128x1xf32, #tpu.memory_space<vmem>>, vector<128x1xf32>
    %8 = arith.addf %6, %7 : vector<128x1xf32>
    %cst_9 = arith.constant 0.000000e+00 : f32
    %9 = vector.broadcast %cst_9 : f32 to vector<128x1xf32>
    %10 = arith.maximumf %8, %9 : vector<128x1xf32>
    %11 = arith.truncf %10 : vector<128x1xf32> to vector<128x1xbf16>
    %12 = vector.shape_cast %11 : vector<128x1xbf16> to vector<128x1xbf16>
    %13 = vector.broadcast %12 : vector<128x1xbf16> to vector<128x256xbf16>
    %c0_10 = arith.constant 0 : index
    %c0_11 = arith.constant 0 : index
    %c0_12 = arith.constant 0 : index
    %14 = vector.load %arg5[%c0_10, %c0_11, %c0_12] : memref<1x128x256xbf16, #tpu.memory_space<vmem>>, vector<1x128x256xbf16>
    %15 = vector.shape_cast %14 : vector<1x128x256xbf16> to vector<128x256xbf16>
    %16 = vector.shape_cast %13 : vector<128x256xbf16> to vector<1x128x256xbf16>
    tpu.vector_store %arg5[%c0_10, %c0_11, %c0_12], %16 {strides = array<i32>} : memref<1x128x256xbf16, #tpu.memory_space<vmem>>, vector<1x128x256xbf16>,
    return
  }
  func.func @transform_0(%arg0: i32) -> (i32, i32, i32) {
    %c0_i32 = arith.constant 0 : i32
    %c0_i32_0 = arith.constant 0 : i32
    %c0_i32_1 = arith.constant 0 : i32
    return %arg0, %c0_i32, %c0_i32_0 : i32, i32, i32
  }
  func.func @transform_1(%arg0: i32) -> (i32, i32) {
    %c0_i32 = arith.constant 0 : i32
    %c0_i32_0 = arith.constant 0 : i32
    %c0_i32_1 = arith.constant 0 : i32
    return %c0_i32, %c0_i32_0 : i32, i32
  }
  func.func @transform_2(%arg0: i32) -> (i32, i32) {
    %c0_i32 = arith.constant 0 : i32
    %c0_i32_0 = arith.constant 0 : i32
    %c0_i32_1 = arith.constant 0 : i32
    return %c0_i32, %c0_i32_0 : i32, i32
  }
  func.func @transform_3(%arg0: i32) -> (i32, i32) {
    %c0_i32 = arith.constant 0 : i32
    %c0_i32_0 = arith.constant 0 : i32
    %c0_i32_1 = arith.constant 0 : i32
    return %c0_i32, %c0_i32_0 : i32, i32
  }
  func.func @transform_4(%arg0: i32) -> (i32, i32, i32) {
    %c0_i32 = arith.constant 0 : i32
    %c0_i32_0 = arith.constant 0 : i32
    %c0_i32_1 = arith.constant 0 : i32
    return %arg0, %c0_i32, %c0_i32_0 : i32, i32, i32
  }
}

</mosaic_0001>

<llo_original>
// kernel: psp_block_forward.1
$region0: #{psp_block_forward.1}
  #allocation0 [shape = 'u32[]', space=smem, size = 0x4, offset = 0x4, fixed_abs, tag = 'smem constant byte address 0x4 - core index']
  #allocation1 [shape = 'u32[144,128]{1,0:T(1,128)}', space=vmem, size = 0x12000, scoped, tag = 'internal scratch']
  %s0 = inlined_call_operand.vmem [shape: bf16[2,64,256], index: 0, kind: input, shape index: {}]
  %s1 = inlined_call_operand.vmem [shape: bf16[256,1], index: 1, kind: input, shape index: {}]
  %s2 = inlined_call_operand.vmem [shape: bf16[128,64], index: 2, kind: input, shape index: {}]
  %s3 = inlined_call_operand.vmem [shape: f32[128,1], index: 3, kind: input, shape index: {}]
  %s4 = inlined_call_operand.vmem [shape: bf16[2,128,256], index: 4, kind: output, shape index: {}]
  %s5 = sld [smem:[#allocation0]]
  $region49: #{psp_block_forward.1} parent=0
    _
  %s7 = ssub.s32 1, %s5
  %s8 = scalar_select 0, %s7, %s5
  loop: start=0, step=1, limit=4
  $region2: #{psp_block_forward.1} parent=0 // loop_pre_header
    _
  $region3: #{psp_block_forward.1} parent=0 // loop_header
    %s10 = sphi 0, %s14
    %p11 = scmp.ge.s32.totalorder %s10, 4
    %s20 = sphi 0, %s22
    %s23 = sphi 0, %s20
    %s24 = sphi 0, %s23
    %s40 = sphi 0, %s24
    %s44 = sphi 0, %s44
    %s46 = sphi 0, %s44
    %s47 = sphi 0, %s46
    %s61 = sphi 0, %s47
    %s65 = sphi 0, %s65
    %s67 = sphi 0, %s65
    %s68 = sphi 0, %s67
    %s82 = sphi 0, %s68
    %s86 = sphi 0, %s86
    %s88 = sphi 0, %s86
    %s89 = sphi 0, %s88
    %s103 = sphi 0, %s89
    %s109 = sphi 0, %s111
    %s112 = sphi 0, %s109
    %s113 = sphi 0, %s112
    %s129 = sphi 0, %s113
  $region4: #{psp_block_forward.1} parent=0 // loop_header_branch
    %13 = sbr.rel (%p11) target = $region8
  $region5: #{psp_block_forward.1} parent=0 // loop_body
    %s15 = ssub.s32 %s10, 1
    %s16 = ssub.s32 %s10, 2
    %s17 = sadd.s32 %s10, 1
    %s18 = ssub.s32 %s10, %s17
    %p19 = scmp.eq.s32.totalorder %s18, 0
    %s21 = sadd.s32 %s20, 1
    %s22 = scalar_select %p19, %s20, %s21
    %p25 = pneg %p19
    %p26 = scmp.eq.s32.totalorder %s10, 1
    %p27 = por %p25, %p26
    %p28 = scmp.ne.s32.totalorder %s20, %s23
    %p29 = scmp.eq.s32.totalorder %s10, 0
    %p30 = por %p28, %p29
    %p31 = scmp.ne.s32.totalorder %s20, %s23
    %p32 = scmp.eq.s32.totalorder %s15, 1
    %p33 = por %p31, %p32
    %p34 = scmp.ne.s32.totalorder %s23, %s24
    %p35 = scmp.eq.s32.totalorder %s15, 0
    %p36 = por %p34, %p35
    %p37 = scmp.ne.s32.totalorder %s23, %s24
    %p38 = scmp.eq.s32.totalorder %s16, 1
    %p39 = por %p37, %p38
    %p41 = scmp.ne.s32.totalorder %s24, %s40
    %p42 = scmp.eq.s32.totalorder %s16, 0
    %p43 = por %p41, %p42
    %s45 = sadd.s32 %s44, 1
    %p48 = scmp.eq.s32.totalorder %s10, 1
    %p49 = scmp.ne.s32.totalorder %s44, %s46
    %p50 = scmp.eq.s32.totalorder %s10, 0
    %p51 = por %p49, %p50
    %p52 = scmp.ne.s32.totalorder %s44, %s46
    %p53 = scmp.eq.s32.totalorder %s15, 1
    %p54 = por %p52, %p53
    %p55 = scmp.ne.s32.totalorder %s46, %s47
    %p56 = scmp.eq.s32.totalorder %s15, 0
    %p57 = por %p55, %p56
    %p58 = scmp.ne.s32.totalorder %s46, %s47
    %p59 = scmp.eq.s32.totalorder %s16, 1
    %p60 = por %p58, %p59
    %p62 = scmp.ne.s32.totalorder %s47, %s61
    %p63 = scmp.eq.s32.totalorder %s16, 0
    %p64 = por %p62, %p63
    %s66 = sadd.s32 %s65, 1
    %p69 = scmp.eq.s32.totalorder %s10, 1
    %p70 = scmp.ne.s32.totalorder %s65, %s67
    %p71 = scmp.eq.s32.totalorder %s10, 0
    %p72 = por %p70, %p71
    %p73 = scmp.ne.s32.totalorder %s65, %s67
    %p74 = scmp.eq.s32.totalorder %s15, 1
    %p75 = por %p73, %p74
    %p76 = scmp.ne.s32.totalorder %s67, %s68
    %p77 = scmp.eq.s32.totalorder %s15, 0
    %p78 = por %p76, %p77
    %p79 = scmp.ne.s32.totalorder %s67, %s68
    %p80 = scmp.eq.s32.totalorder %s16, 1
    %p81 = por %p79, %p80
    %p83 = scmp.ne.s32.totalorder %s68, %s82
    %p84 = scmp.eq.s32.totalorder %s16, 0
    %p85 = por %p83, %p84
    %s87 = sadd.s32 %s86, 1
    %p90 = scmp.eq.s32.totalorder %s10, 1
    %p91 = scmp.ne.s32.totalorder %s86, %s88
    %p92 = scmp.eq.s32.totalorder %s10, 0
    %p93 = por %p91, %p92
    %p94 = scmp.ne.s32.totalorder %s86, %s88
    %p95 = scmp.eq.s32.totalorder %s15, 1
    %p96 = por %p94, %p95
    %p97 = scmp.ne.s32.totalorder %s88, %s89
    %p98 = scmp.eq.s32.totalorder %s15, 0
    %p99 = por %p97, %p98
    %p100 = scmp.ne.s32.totalorder %s88, %s89
    %p101 = scmp.eq.s32.totalorder %s16, 1
    %p102 = por %p100, %p101
    %p104 = scmp.ne.s32.totalorder %s89, %s103
    %p105 = scmp.eq.s32.totalorder %s16, 0
    %p106 = por %p104, %p105
    %s107 = ssub.s32 %s10, %s17
    %p108 = scmp.eq.s32.totalorder %s107, 0
    %s110 = sadd.s32 %s109, 1
    %s111 = scalar_select %p108, %s109, %s110
    %p114 = pneg %p108
    %p115 = scmp.eq.s32.totalorder %s10, 1
    %p116 = por %p114, %p115
    %p117 = scmp.ne.s32.totalorder %s109, %s112
    %p118 = scmp.eq.s32.totalorder %s10, 0
    %p119 = por %p117, %p118
    %p120 = scmp.ne.s32.totalorder %s109, %s112
    %p121 = scmp.eq.s32.totalorder %s15, 1
    %p122 = por %p120, %p121
    %p123 = scmp.ne.s32.totalorder %s112, %s113
    %p124 = scmp.eq.s32.totalorder %s15, 0
    %p125 = por %p123, %p124
    %p126 = scmp.ne.s32.totalorder %s112, %s113
    %p127 = scmp.eq.s32.totalorder %s16, 1
    %p128 = por %p126, %p127
    %p130 = scmp.ne.s32.totalorder %s113, %s129
    %p131 = scmp.eq.s32.totalorder %s16, 0
    %p132 = por %p130, %p131
    %p133 = scmp.le.s32.totalorder 1, %s10
    %p134 = scmp.lt.s32.totalorder %s10, 3
    %p135 = pnand %p133, %p134
    %p136 = pneg %p135
    // Predicated region
    $region9: #{psp_block_forward.1} parent=5 // pred_check
      _
    $region10: #{psp_block_forward.1} parent=5 // pred_check_branch
      %138 = sbr.rel (%p135) target = $region12
    $region11: #{psp_block_forward.1} parent=5 // pred_region
      %s139 = ssub.s32 %s10, 1
      // Predicated region
      $region13: #{psp_block_forward.1} parent=11 // pred_check
        %p140 = pneg %p57
      $region14: #{psp_block_forward.1} parent=11 // pred_check_branch
        %142 = sbr.rel (%p140) target = $region16
      $region15: #{psp_block_forward.1} parent=11 // pred_region
        _
      $region16: #{psp_block_forward.1} parent=11 // pred_fallthru
        _
      // Predicated region
      $region17: #{psp_block_forward.1} parent=11 // pred_check
        %p143 = pneg %p78
      $region18: #{psp_block_forward.1} parent=11 // pred_check_branch
        %145 = sbr.rel (%p143) target = $region20
      $region19: #{psp_block_forward.1} parent=11 // pred_region
        _
      $region20: #{psp_block_forward.1} parent=11 // pred_fallthru
        _
      // Predicated region
      $region21: #{psp_block_forward.1} parent=11 // pred_check
        %p146 = pneg %p99
      $region22: #{psp_block_forward.1} parent=11 // pred_check_branch
        %148 = sbr.rel (%p146) target = $region24
      $region23: #{psp_block_forward.1} parent=11 // pred_region
        _
      $region24: #{psp_block_forward.1} parent=11 // pred_fallthru
        _
    $region12: #{psp_block_forward.1} parent=5 // pred_fallthru
      _
    %p149 = scmp.lt.s32.totalorder %s10, 2
    // Predicated region
    $region25: #{psp_block_forward.1} parent=5 // pred_check
      %p150 = pneg %p149
    $region26: #{psp_block_forward.1} parent=5 // pred_check_branch
      %152 = sbr.rel (%p150) target = $region28
    $region27: #{psp_block_forward.1} parent=5 // pred_region
      // Predicated region
      $region29: #{psp_block_forward.1} parent=27 // pred_check
        %p153 = pneg %p30
      $region30: #{psp_block_forward.1} parent=27 // pred_check_branch
        %155 = sbr.rel (%p153) target = $region32
      $region31: #{psp_block_forward.1} parent=27 // pred_region
        %p156 = scmp.lt.s32.totalorder %s10, 1
        %s157 = scalar_select %p156, %s10, 1
        %s158 = smul.addr %s157, 16
        %s159 = smul.addr %s158, 4
        %s160 = scalar_lea.vmem %s0, %s159
      $region32: #{psp_block_forward.1} parent=27 // pred_fallthru
        _
    $region28: #{psp_block_forward.1} parent=5 // pred_fallthru
      _
    %p161 = scmp.le.s32.totalorder 1, %s10
    %p162 = scmp.lt.s32.totalorder %s10, 3
    %p163 = pnand %p161, %p162
    %p164 = pneg %p163
    // Predicated region
    $region33: #{psp_block_forward.1} parent=5 // pred_check
      _
    $region34: #{psp_block_forward.1} parent=5 // pred_check_branch
      %166 = sbr.rel (%p163) target = $region36
    $region35: #{psp_block_forward.1} parent=5 // pred_region
      %s167 = ssub.s32 %s10, 1
      %p168 = scmp.lt.s32.totalorder %s15, 1
      %s169 = scalar_select %p168, %s15, 1
      %s170 = smul.addr %s169, 16
      %s171 = smul.addr %s170, 4
      %s172 = scalar_lea.vmem %s0, %s171
      %p173 = pneg %p36
      %p174 = pneg %p33
      %p175 = pneg %p57
      %p176 = pneg %p54
      %p177 = pneg %p78
      %p178 = pneg %p75
      %p179 = pneg %p99
      %p180 = pneg %p96
      %p181 = pneg %p125
      %p182 = pneg %p122
      %p183 = scmp.lt.s32.totalorder %s15, 1
      %s184 = scalar_select %p183, %s15, 1
      %s185 = smul.addr %s184, 32
      %s186 = smul.addr %s185, 4
      %s187 = scalar_lea.vmem %s4, %s186
      %p188 = scmp.lt.s32.totalorder %s15, 1
      %s189 = scalar_select %p188, %s15, 1
      %s190 = smul.addr %s189, 16
      %s191 = smul.addr %s190, 4
      %s192 = scalar_lea.vmem %s0, %s191
      %p193 = scmp.lt.s32.totalorder %s15, 1
      %s194 = scalar_select %p193, %s15, 1
      %s195 = smul.addr %s194, 32
      %s196 = smul.addr %s195, 4
      %s197 = scalar_lea.vmem %s4, %s196
      %v199 = vld [vmem:[%s192] sm:$0xff]
      %v200 = vld [vmem:[%s192 + $0x8] sm:$0xff]
      %v201 = vld [vmem:[%s192 + $0x10] sm:$0xff]
      %v202 = vld [vmem:[%s192 + $0x18] sm:$0xff]
      %v203 = vld [vmem:[%s192 + $0x20] sm:$0xff]
      %v204 = vld [vmem:[%s192 + $0x28] sm:$0xff]
      %v205 = vld [vmem:[%s192 + $0x30] sm:$0xff]
      %v206 = vld [vmem:[%s192 + $0x38] sm:$0xff]
      %v207 = vld [vmem:[%s1] sm:$0xf]
      %v208 = vld [vmem:[%s1 + $0x4] sm:$0xf]
      %v209 = vld [vmem:[%s1 + $0x8] sm:$0xf]
      %v210 = vld [vmem:[%s1 + $0xc] sm:$0xf]
      %v211 = vld [vmem:[%s1 + $0x10] sm:$0xf]
      %v212 = vld [vmem:[%s1 + $0x14] sm:$0xf]
      %v213 = vld [vmem:[%s1 + $0x18] sm:$0xf]
      %v214 = vld [vmem:[%s1 + $0x1c] sm:$0xf]
      %v215 = vld [vmem:[%s1 + $0x20] sm:$0xf]
      %v216 = vld [vmem:[%s1 + $0x24] sm:$0xf]
      %v217 = vld [vmem:[%s1 + $0x28] sm:$0xf]
      %v218 = vld [vmem:[%s1 + $0x2c] sm:$0xf]
      %v219 = vld [vmem:[%s1 + $0x30] sm:$0xf]
      %v220 = vld [vmem:[%s1 + $0x34] sm:$0xf]
      %v221 = vld [vmem:[%s1 + $0x38] sm:$0xf]
      %v222 = vld [vmem:[%s1 + $0x3c] sm:$0xf]
      %v223 = vld [vmem:[%s1 + $0x40] sm:$0xf]
      %v224 = vld [vmem:[%s1 + $0x44] sm:$0xf]
      %v225 = vld [vmem:[%s1 + $0x48] sm:$0xf]
      %v226 = vld [vmem:[%s1 + $0x4c] sm:$0xf]
      %v227 = vld [vmem:[%s1 + $0x50] sm:$0xf]
      %v228 = vld [vmem:[%s1 + $0x54] sm:$0xf]
      %v229 = vld [vmem:[%s1 + $0x58] sm:$0xf]
      %v230 = vld [vmem:[%s1 + $0x5c] sm:$0xf]
      %v231 = vld [vmem:[%s1 + $0x60] sm:$0xf]
      %v232 = vld [vmem:[%s1 + $0x64] sm:$0xf]
      %v233 = vld [vmem:[%s1 + $0x68] sm:$0xf]
      %v234 = vld [vmem:[%s1 + $0x6c] sm:$0xf]
      %v235 = vld [vmem:[%s1 + $0x70] sm:$0xf]
      %v236 = vld [vmem:[%s1 + $0x74] sm:$0xf]
      %v237 = vld [vmem:[%s1 + $0x78] sm:$0xf]
      %v238 = vld [vmem:[%s1 + $0x7c] sm:$0xf]
      %v247 = vunpack.c.l.b16 %v199
      %v248 = vunpack.c.h.b16 %v199
      %v249 = vunpack.c.l.b16 %v200
      %v250 = vunpack.c.h.b16 %v200
      %v251 = vunpack.c.l.b16 %v201
      %v252 = vunpack.c.h.b16 %v201
      %v253 = vunpack.c.l.b16 %v202
      %v254 = vunpack.c.h.b16 %v202
      %v255 = vunpack.c.l.b16 %v203
      %v256 = vunpack.c.h.b16 %v203
      %v257 = vunpack.c.l.b16 %v204
      %v258 = vunpack.c.h.b16 %v204
      %v259 = vunpack.c.l.b16 %v205
      %v260 = vunpack.c.h.b16 %v205
      %v261 = vunpack.c.l.b16 %v206
      %v262 = vunpack.c.h.b16 %v206
      %v263 = vpack.c.b16 %v249, %v247
      %v264 = vpack.c.b16 %v250, %v248
      %v265 = vpack.c.b16 %v253, %v251
      %v266 = vpack.c.b16 %v254, %v252
      %v267 = vpack.c.b16 %v257, %v255
      %v268 = vpack.c.b16 %v258, %v256
      %v269 = vpack.c.b16 %v261, %v259
      %v270 = vpack.c.b16 %v262, %v260
      %v311 = vunpack.c.l.b16 %v207
      %v312 = vunpack.c.l.b16 %v208
      %v313 = vunpack.c.l.b16 %v209
      %v314 = vunpack.c.l.b16 %v210
      %v315 = vunpack.c.l.b16 %v211
      %v316 = vunpack.c.l.b16 %v212
      %v317 = vunpack.c.l.b16 %v213
      %v318 = vunpack.c.l.b16 %v214
      %v319 = vunpack.c.l.b16 %v215
      %v320 = vunpack.c.l.b16 %v216
      %v321 = vunpack.c.l.b16 %v217
      %v322 = vunpack.c.l.b16 %v218
      %v323 = vunpack.c.l.b16 %v219
      %v324 = vunpack.c.l.b16 %v220
      %v325 = vunpack.c.l.b16 %v221
      %v326 = vunpack.c.l.b16 %v222
      %v327 = vunpack.c.l.b16 %v223
      %v328 = vunpack.c.l.b16 %v224
      %v329 = vunpack.c.l.b16 %v225
      %v330 = vunpack.c.l.b16 %v226
      %v331 = vunpack.c.l.b16 %v227
      %v332 = vunpack.c.l.b16 %v228
      %v333 = vunpack.c.l.b16 %v229
      %v334 = vunpack.c.l.b16 %v230
      %v335 = vunpack.c.l.b16 %v231
      %v336 = vunpack.c.l.b16 %v232
      %v337 = vunpack.c.l.b16 %v233
      %v338 = vunpack.c.l.b16 %v234
      %v339 = vunpack.c.l.b16 %v235
      %v340 = vunpack.c.l.b16 %v236
      %v341 = vunpack.c.l.b16 %v237
      %v342 = vunpack.c.l.b16 %v238
      %v343 = vpack.c.b16 %v312, %v311
      %v344 = vpack.c.b16 %v314, %v313
      %v345 = vpack.c.b16 %v316, %v315
      %v346 = vpack.c.b16 %v318, %v317
      %v347 = vpack.c.b16 %v320, %v319
      %v348 = vpack.c.b16 %v322, %v321
      %v349 = vpack.c.b16 %v324, %v323
      %v350 = vpack.c.b16 %v326, %v325
      %v351 = vpack.c.b16 %v328, %v327
      %v352 = vpack.c.b16 %v330, %v329
      %v353 = vpack.c.b16 %v332, %v331
      %v354 = vpack.c.b16 %v334, %v333
      %v355 = vpack.c.b16 %v336, %v335
      %v356 = vpack.c.b16 %v338, %v337
      %v357 = vpack.c.b16 %v340, %v339
      %v358 = vpack.c.b16 %v342, %v341
      %375 = vmatprep.subr.bf16.mxu0 0
      %376 = vmatpush1.bf16.msra.mxu0 %v343
      %377 = vmatprep.subr.bf16.mxu0 0
      %378 = vmatpush1.bf16.msra.mxu0 %v344
      %379 = vmatprep.subr.bf16.mxu0 0
      %380 = vmatpush1.bf16.msra.mxu0 %v345
      %381 = vmatprep.subr.bf16.mxu0 0
      %382 = vmatpush1.bf16.msra.mxu0 %v346
      %383 = vmatprep.subr.bf16.mxu0 0
      %384 = vmatpush1.bf16.msra.mxu0 %v347
      %385 = vmatprep.subr.bf16.mxu0 0
      %386 = vmatpush1.bf16.msra.mxu0 %v348
      %387 = vmatprep.subr.bf16.mxu0 0
      %388 = vmatpush1.bf16.msra.mxu0 %v349
      %389 = vmatprep.subr.bf16.mxu0 0
      %390 = vmatpush1.bf16.msra.mxu0 %v350
      %391 = vmatprep.subr.bf16.mxu0 0
      %392 = vmatpush1.bf16.msra.mxu0 %v351
      %393 = vmatprep.subr.bf16.mxu0 0
      %394 = vmatpush1.bf16.msra.mxu0 %v352
      %395 = vmatprep.subr.bf16.mxu0 0
      %396 = vmatpush1.bf16.msra.mxu0 %v353
      %397 = vmatprep.subr.bf16.mxu0 0
      %398 = vmatpush1.bf16.msra.mxu0 %v354
      %399 = vmatprep.subr.bf16.mxu0 0
      %400 = vmatpush1.bf16.msra.mxu0 %v355
      %401 = vmatprep.subr.bf16.mxu0 0
      %402 = vmatpush1.bf16.msra.mxu0 %v356
      %403 = vmatprep.subr.bf16.mxu0 0
      %404 = vmatpush1.bf16.msra.mxu0 %v357
      %405 = vmatprep.subr.bf16.mxu0 0
      %406 = vmatpush1.bf16.msra.mxu0 %v358
      %407 = vmatprep.mubr.bf16.mxu0 %v264
      %408 = vmatmul.mubr.bf16.gmra.mrb[0].mxu0 %v263
      %v409 = vpop.f32.mrb[0].mxu0
      %v410 = vadd.f32 0.0, %v409
      %v411 = vpop.f32.mrb[0].mxu0
      %v412 = vpop.f32.mrb[0].mxu0
      %v413 = vadd.f32 0.0, %v412
      %v414 = vpop.f32.mrb[0].mxu0
      %415 = vmatprep.mubr.bf16.mxu0 %v266
      %416 = vmatmul.mubr.bf16.gmra.mrb[0].mxu0 %v265
      %v417 = vpop.f32.mrb[0].mxu0
      %v418 = vadd.f32 0.0, %v417
      %v419 = vpop.f32.mrb[0].mxu0
      %v420 = vpop.f32.mrb[0].mxu0
      %v421 = vadd.f32 0.0, %v420
      %v422 = vpop.f32.mrb[0].mxu0
      %423 = vmatprep.mubr.bf16.mxu0 %v268
      %424 = vmatmul.mubr.bf16.gmra.mrb[0].mxu0 %v267
      %v425 = vpop.f32.mrb[0].mxu0
      %v426 = vadd.f32 0.0, %v425
      %v427 = vpop.f32.mrb[0].mxu0
      %v428 = vpop.f32.mrb[0].mxu0
      %v429 = vadd.f32 0.0, %v428
      %v430 = vpop.f32.mrb[0].mxu0
      %431 = vmatprep.mubr.bf16.mxu0 %v270
      %432 = vmatmul.mubr.bf16.gmra.mrb[0].mxu0 %v269
      %v433 = vpop.f32.mrb[0].mxu0
      %v434 = vadd.f32 0.0, %v433
      %v435 = vpop.f32.mrb[0].mxu0
      %v436 = vpop.f32.mrb[0].mxu0
      %v437 = vadd.f32 0.0, %v436
      %v438 = vpop.f32.mrb[0].mxu0
      %439 = vdwg.mxu0
      %v440 = vld [vmem:[%s2] sm:$0xf]
      %v441 = vld [vmem:[%s2 + $0x4] sm:$0xf]
      %v442 = vld [vmem:[%s2 + $0x8] sm:$0xf]
      %v443 = vld [vmem:[%s2 + $0xc] sm:$0xf]
      %v444 = vld [vmem:[%s2 + $0x10] sm:$0xf]
      %v445 = vld [vmem:[%s2 + $0x14] sm:$0xf]
      %v446 = vld [vmem:[%s2 + $0x18] sm:$0xf]
      %v447 = vld [vmem:[%s2 + $0x1c] sm:$0xf]
      %v448 = vld [vmem:[%s2 + $0x20] sm:$0xf]
      %v449 = vld [vmem:[%s2 + $0x24] sm:$0xf]
      %v450 = vld [vmem:[%s2 + $0x28] sm:$0xf]
      %v451 = vld [vmem:[%s2 + $0x2c] sm:$0xf]
      %v452 = vld [vmem:[%s2 + $0x30] sm:$0xf]
      %v453 = vld [vmem:[%s2 + $0x34] sm:$0xf]
      %v454 = vld [vmem:[%s2 + $0x38] sm:$0xf]
      %v455 = vld [vmem:[%s2 + $0x3c] sm:$0xf]
      %v456 = vpack.c.bf16 %v413, %v410
      %v457 = vpack.c.bf16 %v421, %v418
      %v458 = vpack.c.bf16 %v429, %v426
      %v459 = vpack.c.bf16 %v437, %v434
      %v460 = vld [vmem:[%s3] sm:$0xff]
      %v461 = vld [vmem:[%s3 + $0x8] sm:$0xff]
      %v462 = vld [vmem:[%s3 + $0x10] sm:$0xff]
      %v463 = vld [vmem:[%s3 + $0x18] sm:$0xff]
      %v464 = vld [vmem:[%s3 + $0x20] sm:$0xff]
      %v465 = vld [vmem:[%s3 + $0x28] sm:$0xff]
      %v466 = vld [vmem:[%s3 + $0x30] sm:$0xff]
      %v467 = vld [vmem:[%s3 + $0x38] sm:$0xff]
      %v468 = vld [vmem:[%s3 + $0x40] sm:$0xff]
      %v469 = vld [vmem:[%s3 + $0x48] sm:$0xff]
      %v470 = vld [vmem:[%s3 + $0x50] sm:$0xff]
      %v471 = vld [vmem:[%s3 + $0x58] sm:$0xff]
      %v472 = vld [vmem:[%s3 + $0x60] sm:$0xff]
      %v473 = vld [vmem:[%s3 + $0x68] sm:$0xff]
      %v474 = vld [vmem:[%s3 + $0x70] sm:$0xff]
      %v475 = vld [vmem:[%s3 + $0x78] sm:$0xff]
      %v492 = vunpack.c.l.b16 %v440
      %v493 = vunpack.c.l.b16 %v441
      %v494 = vunpack.c.l.b16 %v442
      %v495 = vunpack.c.l.b16 %v443
      %v496 = vunpack.c.l.b16 %v444
      %v497 = vunpack.c.l.b16 %v445
      %v498 = vunpack.c.l.b16 %v446
      %v499 = vunpack.c.l.b16 %v447
      %v500 = vunpack.c.l.b16 %v448
      %v501 = vunpack.c.l.b16 %v449
      %v502 = vunpack.c.l.b16 %v450
      %v503 = vunpack.c.l.b16 %v451
      %v504 = vunpack.c.l.b16 %v452
      %v505 = vunpack.c.l.b16 %v453
      %v506 = vunpack.c.l.b16 %v454
      %v507 = vunpack.c.l.b16 %v455
      %v508 = vpack.c.b16 %v493, %v492
      %v509 = vpack.c.b16 %v495, %v494
      %v510 = vpack.c.b16 %v497, %v496
      %v511 = vpack.c.b16 %v499, %v498
      %v512 = vpack.c.b16 %v501, %v500
      %v513 = vpack.c.b16 %v503, %v502
      %v514 = vpack.c.b16 %v505, %v504
      %v515 = vpack.c.b16 %v507, %v506
      %vm516 = vcmask 523264
      %v518 = vsel %vm516, %v508, 0
      %v521 = vsel %vm516, %v509, 0
      %v524 = vsel %vm516, %v510, 0
      %v527 = vsel %vm516, %v511, 0
      %v530 = vsel %vm516, %v512, 0
      %v533 = vsel %vm516, %v513, 0
      %v536 = vsel %vm516, %v514, 0
      %v539 = vsel %vm516, %v515, 0
      %541 = vmatprep.subr.bf16.mxu0 0
      %542 = vmatpush1.bf16.msra.mxu0 %v456
      %543 = vmatprep.subr.bf16.mxu0 0
      %544 = vmatpush1.bf16.msra.mxu0 %v457
      %545 = vmatprep.subr.bf16.mxu0 0
      %546 = vmatpush1.bf16.msra.mxu0 %v458
      %547 = vmatprep.subr.bf16.mxu0 0
      %548 = vmatpush1.bf16.msra.mxu0 %v459
      %549 = vmatprep.subr.bf16.mxu0 0
      %550 = vmatpush1.bf16.msra.mxu0 0
      %551 = vmatprep.subr.bf16.mxu0 0
      %552 = vmatpush1.bf16.msra.mxu0 0
      %553 = vmatprep.subr.bf16.mxu0 0
      %554 = vmatpush1.bf16.msra.mxu0 0
      %555 = vmatprep.subr.bf16.mxu0 0
      %556 = vmatpush1.bf16.msra.mxu0 0
      %557 = vmatprep.subr.bf16.mxu0 0
      %558 = vmatpush1.bf16.msra.mxu0 0
      %559 = vmatprep.subr.bf16.mxu0 0
      %560 = vmatpush1.bf16.msra.mxu0 0
      %561 = vmatprep.subr.bf16.mxu0 0
      %562 = vmatpush1.bf16.msra.mxu0 0
      %563 = vmatprep.subr.bf16.mxu0 0
      %564 = vmatpush1.bf16.msra.mxu0 0
      %565 = vmatprep.subr.bf16.mxu0 0
      %566 = vmatpush1.bf16.msra.mxu0 0
      %567 = vmatprep.subr.bf16.mxu0 0
      %568 = vmatpush1.bf16.msra.mxu0 0
      %569 = vmatprep.subr.bf16.mxu0 0
      %570 = vmatpush1.bf16.msra.mxu0 0
      %571 = vmatprep.subr.bf16.mxu0 0
      %572 = vmatpush1.bf16.msra.mxu0 0
      %573 = vmatprep.mubr.bf16.mxu0 0
      %574 = vmatmul.mubr.bf16.gmra.mrb[0].mxu0 %v518
      %v575 = vpop.f32.mrb[0].mxu0
      %v576 = vadd.f32 %v460, %v575
      %v577 = vpop.f32.mrb[0].mxu0
      %v578 = vpop.f32.mrb[0].mxu0
      %v579 = vadd.f32 %v461, %v578
      %v580 = vpop.f32.mrb[0].mxu0
      %581 = vmatprep.mubr.bf16.mxu0 0
      %582 = vmatmul.mubr.bf16.gmra.mrb[0].mxu0 %v521
      %v583 = vpop.f32.mrb[0].mxu0
      %v584 = vadd.f32 %v462, %v583
      %v585 = vpop.f32.mrb[0].mxu0
      %v586 = vpop.f32.mrb[0].mxu0
      %v587 = vadd.f32 %v463, %v586
      %v588 = vpop.f32.mrb[0].mxu0
      %589 = vmatprep.mubr.bf16.mxu0 0
      %590 = vmatmul.mubr.bf16.gmra.mrb[0].mxu0 %v524
      %v591 = vpop.f32.mrb[0].mxu0
      %v592 = vadd.f32 %v464, %v591
      %v593 = vpop.f32.mrb[0].mxu0
      %v594 = vpop.f32.mrb[0].mxu0
      %v595 = vadd.f32 %v465, %v594
      %v596 = vpop.f32.mrb[0].mxu0
      %597 = vmatprep.mubr.bf16.mxu0 0
      %598 = vmatmul.mubr.bf16.gmra.mrb[0].mxu0 %v527
      %v599 = vpop.f32.mrb[0].mxu0
      %v600 = vadd.f32 %v466, %v599
      %v601 = vpop.f32.mrb[0].mxu0
      %v602 = vpop.f32.mrb[0].mxu0
      %v603 = vadd.f32 %v467, %v602
      %v604 = vpop.f32.mrb[0].mxu0
      %605 = vmatprep.mubr.bf16.mxu0 0
      %606 = vmatmul.mubr.bf16.gmra.mrb[0].mxu0 %v530
      %v607 = vpop.f32.mrb[0].mxu0
      %v608 = vadd.f32 %v468, %v607
      %v609 = vpop.f32.mrb[0].mxu0
      %v610 = vpop.f32.mrb[0].mxu0
      %v611 = vadd.f32 %v469, %v610
      %v612 = vpop.f32.mrb[0].mxu0
      %613 = vmatprep.mubr.bf16.mxu0 0
      %614 = vmatmul.mubr.bf16.gmra.mrb[0].mxu0 %v533
      %v615 = vpop.f32.mrb[0].mxu0
      %v616 = vadd.f32 %v470, %v615
      %v617 = vpop.f32.mrb[0].mxu0
      %v618 = vpop.f32.mrb[0].mxu0
      %v619 = vadd.f32 %v471, %v618
      %v620 = vpop.f32.mrb[0].mxu0
      %621 = vmatprep.mubr.bf16.mxu0 0
      %622 = vmatmul.mubr.bf16.gmra.mrb[0].mxu0 %v536
      %v623 = vpop.f32.mrb[0].mxu0
      %v624 = vadd.f32 %v472, %v623
      %v625 = vpop.f32.mrb[0].mxu0
      %v626 = vpop.f32.mrb[0].mxu0
      %v627 = vadd.f32 %v473, %v626
      %v628 = vpop.f32.mrb[0].mxu0
      %629 = vmatprep.mubr.bf16.mxu0 0
      %630 = vmatmul.mubr.bf16.gmra.mrb[0].mxu0 %v539
      %v631 = vpop.f32.mrb[0].mxu0
      %v632 = vadd.f32 %v474, %v631
      %v633 = vpop.f32.mrb[0].mxu0
      %v634 = vpop.f32.mrb[0].mxu0
      %v635 = vadd.f32 %v475, %v634
      %v636 = vpop.f32.mrb[0].mxu0
      %637 = vdwg.mxu0
      %v638 = vmax.f32 %v576, 0.0
      %v639 = vmax.f32 %v579, 0.0
      %v640 = vmax.f32 %v584, 0.0
      %v641 = vmax.f32 %v587, 0.0
      %v642 = vmax.f32 %v592, 0.0
      %v643 = vmax.f32 %v595, 0.0
      %v644 = vmax.f32 %v600, 0.0
      %v645 = vmax.f32 %v603, 0.0
      %v646 = vmax.f32 %v608, 0.0
      %v647 = vmax.f32 %v611, 0.0
      %v648 = vmax.f32 %v616, 0.0
      %v649 = vmax.f32 %v619, 0.0
      %v650 = vmax.f32 %v624, 0.0
      %v651 = vmax.f32 %v627, 0.0
      %v652 = vmax.f32 %v632, 0.0
      %v653 = vmax.f32 %v635, 0.0
      %v654 = vpack.c.bf16 %v639, %v638
      %v655 = vpack.c.bf16 %v641, %v640
      %v656 = vpack.c.bf16 %v643, %v642
      %v657 = vpack.c.bf16 %v645, %v644
      %v658 = vpack.c.bf16 %v647, %v646
      %v659 = vpack.c.bf16 %v649, %v648
      %v660 = vpack.c.bf16 %v651, %v650
      %v661 = vpack.c.bf16 %v653, %v652
      %663 = vset.pattern.permute.xlu0 0
      %664 = vperm.xlu0 %663, %v654
      %v665 = vpop.permute.xlu0 %664
      %667 = vset.pattern.permute.xlu0 0
      %668 = vperm.xlu0 %667, %v655
      %v669 = vpop.permute.xlu0 %668
      %671 = vset.pattern.permute.xlu0 0
      %672 = vperm.xlu0 %671, %v656
      %v673 = vpop.permute.xlu0 %672
      %675 = vset.pattern.permute.xlu0 0
      %676 = vperm.xlu0 %675, %v657
      %v677 = vpop.permute.xlu0 %676
      %679 = vset.pattern.permute.xlu0 0
      %680 = vperm.xlu0 %679, %v658
      %v681 = vpop.permute.xlu0 %680
      %683 = vset.pattern.permute.xlu0 0
      %684 = vperm.xlu0 %683, %v659
      %v685 = vpop.permute.xlu0 %684
      %687 = vset.pattern.permute.xlu0 0
      %688 = vperm.xlu0 %687, %v660
      %v689 = vpop.permute.xlu0 %688
      %691 = vset.pattern.permute.xlu0 0
      %692 = vperm.xlu0 %691, %v661
      %v693 = vpop.permute.xlu0 %692
      %v703 = vunpack.c.l.s4 839922192
      %v704 = vunpack.c.0.s8 %v703
      %v705 = vlaneseq
      %v706 = vshrl.u32 %v705, 7
      %v707 = vsub.s32 %v704, %v706
      %v708 = vrot.slane %v665, %v707
      %v710 = vunpack.c.l.s4 1985246804
      %v711 = vunpack.c.0.s8 %v710
      %v712 = vlaneseq
      %v713 = vshrl.u32 %v712, 7
      %v714 = vsub.s32 %v711, %v713
      %v715 = vrot.slane %v665, %v714
      %v717 = vunpack.c.l.s4 839922192
      %v718 = vunpack.c.0.s8 %v717
      %v719 = vlaneseq
      %v720 = vshrl.u32 %v719, 7
      %v721 = vsub.s32 %v718, %v720
      %v722 = vrot.slane %v669, %v721
      %v724 = vunpack.c.l.s4 1985246804
      %v725 = vunpack.c.0.s8 %v724
      %v726 = vlaneseq
      %v727 = vshrl.u32 %v726, 7
      %v728 = vsub.s32 %v725, %v727
      %v729 = vrot.slane %v669, %v728
      %v731 = vunpack.c.l.s4 839922192
      %v732 = vunpack.c.0.s8 %v731
      %v733 = vlaneseq
      %v734 = vshrl.u32 %v733, 7
      %v735 = vsub.s32 %v732, %v734
      %v736 = vrot.slane %v673, %v735
      %v738 = vunpack.c.l.s4 1985246804
      %v739 = vunpack.c.0.s8 %v738
      %v740 = vlaneseq
      %v741 = vshrl.u32 %v740, 7
      %v742 = vsub.s32 %v739, %v741
      %v743 = vrot.slane %v673, %v742
      %v745 = vunpack.c.l.s4 839922192
      %v746 = vunpack.c.0.s8 %v745
      %v747 = vlaneseq
      %v748 = vshrl.u32 %v747, 7
      %v749 = vsub.s32 %v746, %v748
      %v750 = vrot.slane %v677, %v749
      %v752 = vunpack.c.l.s4 1985246804
      %v753 = vunpack.c.0.s8 %v752
      %v754 = vlaneseq
      %v755 = vshrl.u32 %v754, 7
      %v756 = vsub.s32 %v753, %v755
      %v757 = vrot.slane %v677, %v756
      %v759 = vunpack.c.l.s4 839922192
      %v760 = vunpack.c.0.s8 %v759
      %v761 = vlaneseq
      %v762 = vshrl.u32 %v761, 7
      %v763 = vsub.s32 %v760, %v762
      %v764 = vrot.slane %v681, %v763
      %v766 = vunpack.c.l.s4 1985246804
      %v767 = vunpack.c.0.s8 %v766
      %v768 = vlaneseq
      %v769 = vshrl.u32 %v768, 7
      %v770 = vsub.s32 %v767, %v769
      %v771 = vrot.slane %v681, %v770
      %v773 = vunpack.c.l.s4 839922192
      %v774 = vunpack.c.0.s8 %v773
      %v775 = vlaneseq
      %v776 = vshrl.u32 %v775, 7
      %v777 = vsub.s32 %v774, %v776
      %v778 = vrot.slane %v685, %v777
      %v780 = vunpack.c.l.s4 1985246804
      %v781 = vunpack.c.0.s8 %v780
      %v782 = vlaneseq
      %v783 = vshrl.u32 %v782, 7
      %v784 = vsub.s32 %v781, %v783
      %v785 = vrot.slane %v685, %v784
      %v787 = vunpack.c.l.s4 839922192
      %v788 = vunpack.c.0.s8 %v787
      %v789 = vlaneseq
      %v790 = vshrl.u32 %v789, 7
      %v791 = vsub.s32 %v788, %v790
      %v792 = vrot.slane %v689, %v791
      %v794 = vunpack.c.l.s4 1985246804
      %v795 = vunpack.c.0.s8 %v794
      %v796 = vlaneseq
      %v797 = vshrl.u32 %v796, 7
      %v798 = vsub.s32 %v795, %v797
      %v799 = vrot.slane %v689, %v798
      %v801 = vunpack.c.l.s4 839922192
      %v802 = vunpack.c.0.s8 %v801
      %v803 = vlaneseq
      %v804 = vshrl.u32 %v803, 7
      %v805 = vsub.s32 %v802, %v804
      %v806 = vrot.slane %v693, %v805
      %v808 = vunpack.c.l.s4 1985246804
      %v809 = vunpack.c.0.s8 %v808
      %v810 = vlaneseq
      %v811 = vshrl.u32 %v810, 7
      %v812 = vsub.s32 %v809, %v811
      %v813 = vrot.slane %v693, %v812
      %830 = vst [vmem:[%s197] sm:$0xff] %v708
      %831 = vst [vmem:[%s197 + $0x8] sm:$0xff] %v715
      %832 = vst [vmem:[%s197 + $0x10] sm:$0xff] %v722
      %833 = vst [vmem:[%s197 + $0x18] sm:$0xff] %v729
      %834 = vst [vmem:[%s197 + $0x20] sm:$0xff] %v736
      %835 = vst [vmem:[%s197 + $0x28] sm:$0xff] %v743
      %836 = vst [vmem:[%s197 + $0x30] sm:$0xff] %v750
      %837 = vst [vmem:[%s197 + $0x38] sm:$0xff] %v757
      %838 = vst [vmem:[%s197 + $0x40] sm:$0xff] %v764
      %839 = vst [vmem:[%s197 + $0x48] sm:$0xff] %v771
      %840 = vst [vmem:[%s197 + $0x50] sm:$0xff] %v778
      %841 = vst [vmem:[%s197 + $0x58] sm:$0xff] %v785
      %842 = vst [vmem:[%s197 + $0x60] sm:$0xff] %v792
      %843 = vst [vmem:[%s197 + $0x68] sm:$0xff] %v799
      %844 = vst [vmem:[%s197 + $0x70] sm:$0xff] %v806
      %845 = vst [vmem:[%s197 + $0x78] sm:$0xff] %v813
      %p846 = scmp.lt.s32.totalorder %s15, 1
      %s847 = scalar_select %p846, %s15, 1
      %s848 = smul.addr %s847, 32
      %s849 = smul.addr %s848, 4
      %s850 = scalar_lea.vmem %s4, %s849
      // Predicated region
      $region37: #{psp_block_forward.1} parent=35 // pred_check
        %p851 = pneg %p122
      $region38: #{psp_block_forward.1} parent=35 // pred_check_branch
        %853 = sbr.rel (%p851) target = $region40
      $region39: #{psp_block_forward.1} parent=35 // pred_region
        _
      $region40: #{psp_block_forward.1} parent=35 // pred_fallthru
        _
    $region36: #{psp_block_forward.1} parent=5 // pred_fallthru
      _
    %p854 = scmp.le.s32.totalorder 2, %s10
    // Predicated region
    $region41: #{psp_block_forward.1} parent=5 // pred_check
      %p855 = pneg %p854
    $region42: #{psp_block_forward.1} parent=5 // pred_check_branch
      %857 = sbr.rel (%p855) target = $region44
    $region43: #{psp_block_forward.1} parent=5 // pred_region
      %s858 = ssub.s32 %s10, 2
      // Predicated region
      $region45: #{psp_block_forward.1} parent=43 // pred_check
        %p859 = pneg %p128
      $region46: #{psp_block_forward.1} parent=43 // pred_check_branch
        %861 = sbr.rel (%p859) target = $region48
      $region47: #{psp_block_forward.1} parent=43 // pred_region
        %p862 = scmp.lt.s32.totalorder %s16, 1
        %s863 = scalar_select %p862, %s16, 1
        %s864 = smul.addr %s863, 32
        %s865 = smul.addr %s864, 4
        %s866 = scalar_lea.vmem %s4, %s865
      $region48: #{psp_block_forward.1} parent=43 // pred_fallthru
        _
    $region44: #{psp_block_forward.1} parent=5 // pred_fallthru
      _
  $region6: #{psp_block_forward.1} parent=0 // loop_footer
    %s14 = sadd.s32 1, %s10
  $region7: #{psp_block_forward.1} parent=0 // loop_footer_branch
    %9 = sbr.rel target = $region3
  $region8: #{psp_block_forward.1} parent=0 // loop_exit
    _

</llo_original>
